<compile_context>
chip_gen: v7x
topology: tpu7x:2x2x1
jax: 0.10.0
libtpu: 0.0.40
codegen_flags: <defaults>
</compile_context>

<pallas_src>
import functools

import jax
import jax.numpy as jnp
from jax import lax
from jax.experimental import pallas as pl
from jax.experimental.pallas import tpu as pltpu


def _round_up(x, m):
    return (x + m - 1) // m * m


def _style_loss_kernel(fl_ref, fr_ref, tgt_ref, g_ref, loss_ref, acc_ref, *, scale):
    # fl_ref:  VMEM (tm, tk)       features, row tile i      (lhs of F @ F^T)
    # fr_ref:  VMEM (tn, tk)       features, row tile j      (rhs of F @ F^T)
    # tgt_ref: VMEM (tm, tn) f32   pre-scaled target Gram tile (resident across k)
    # g_ref:   VMEM (tm, tn) f32   output: weighted Gram tile
    # loss_ref:VMEM (1,1,1,tn) f32 output: per-(i,j) partial sum of squared diff
    # acc_ref: VMEM (tm, tn) f32   scratch accumulator (persists across k steps)
    k = pl.program_id(2)

    @pl.when(k == 0)
    def _init():
        acc_ref[...] = jnp.zeros_like(acc_ref)

    # G_tile += F[i-tile] . F[j-tile]^T, contracting the lane (K) axis of both
    # operands directly (no transposed operand materialized).
    acc_ref[...] += lax.dot_general(
        fl_ref[...],
        fr_ref[...],
        dimension_numbers=(((1,), (1,)), ((), ())),
        preferred_element_type=jnp.float32,
    )

    @pl.when(k == pl.num_programs(2) - 1)
    def _finalize():
        # scale == weight / (a*b*c*d), folded host-side into one constant.
        g = acc_ref[...] * scale
        g_ref[...] = g.astype(g_ref.dtype)
        # Loss partial for this (i, j) tile. Padded rows/cols are zero in both
        # g and target, so they contribute nothing.
        diff = g - tgt_ref[...]
        part = jnp.sum(diff * diff, axis=0, keepdims=True)  # (1, tn), lane-dense
        loss_ref[...] = part.reshape(1, 1, 1, part.shape[-1])


def style_loss_forward(x, target_scaled, weight, *, feat_dtype=jnp.float32,
                       tile_m=128, tile_k=2048):
    """StyleLoss forward.

    Args:
      x:             (a, b, c, d) float32 input feature maps (NCHW).
      target_scaled: (a*b, a*b) float32 target Gram matrix, pre-multiplied by
                     `weight` (matches `self.target = target.detach() * weight`).
      weight:        python float, the style weight.
      feat_dtype:    dtype fed to the MXU (float32 keeps exact PyTorch semantics;
                     bfloat16 halves feats HBM/VMEM traffic; accumulation is f32).
      tile_m/tile_k: tile sizes for the Gram rows/cols and the K reduction.

    Returns:
      (output, G, loss): output == x (clone semantics), G the weighted Gram
      matrix of x, loss the scalar MSE against target_scaled.
    """
    # TODO(synk): backward() / autograd-graph retention has no direct Pallas
    # equivalent; wrap this function with jax.grad if gradients are needed.
    a, b, c, d = x.shape
    m, kdim = a * b, c * d
    scale = float(weight) / float(a * b * c * d)

    tm = tn = tile_m
    m_pad = _round_up(m, tm)

    k_pad0 = _round_up(kdim, 128)
    tk = min(tile_k, k_pad0)
    k_pad = _round_up(k_pad0, tk)

    n_i = m_pad // tm
    n_j = m_pad // tn
    n_k = k_pad // tk

    feats = x.reshape(m, kdim).astype(feat_dtype)
    feats = jnp.pad(feats, ((0, m_pad - m), (0, k_pad - kdim)))
    tgt = jnp.pad(target_scaled.astype(jnp.float32),
                  ((0, m_pad - m), (0, m_pad - m)))

    itemsize = jnp.dtype(feat_dtype).itemsize
    cost = pl.CostEstimate(
        flops=2 * m_pad * m_pad * k_pad,
        transcendentals=0,
        bytes_accessed=2 * m_pad * k_pad * itemsize + 2 * m_pad * m_pad * 4,
    )

    kernel = functools.partial(_style_loss_kernel, scale=scale)

    g_pad, loss_parts = pl.pallas_call(
        kernel,
        out_shape=(
            jax.ShapeDtypeStruct((m_pad, m_pad), jnp.float32),
            jax.ShapeDtypeStruct((n_i, n_j, 1, tn), jnp.float32),
        ),
        grid_spec=pltpu.PrefetchScalarGridSpec(
            num_scalar_prefetch=0,
            grid=(n_i, n_j, n_k),
            in_specs=[
                pl.BlockSpec((tm, tk), lambda i, j, k: (i, k)),   # feats (lhs rows)
                pl.BlockSpec((tn, tk), lambda i, j, k: (j, k)),   # feats (rhs rows)
                pl.BlockSpec((tm, tn), lambda i, j, k: (i, j)),   # target tile
            ],
            out_specs=(
                pl.BlockSpec((tm, tn), lambda i, j, k: (i, j)),            # G tile
                pl.BlockSpec((1, 1, 1, tn), lambda i, j, k: (i, j, 0, 0)),  # loss partial
            ),
            scratch_shapes=[pltpu.VMEM((tm, tn), jnp.float32)],
        ),
        compiler_params=pltpu.CompilerParams(
            dimension_semantics=("parallel", "parallel", "arbitrary"),
            vmem_limit_bytes=32 * 1024 * 1024,
        ),
        cost_estimate=cost,
    )(feats, feats, tgt)

    g = g_pad[:m, :m]
    loss = jnp.sum(loss_parts) / float(m * m)

    # `self.output = input.clone()` -- JAX arrays are immutable, so x itself is a
    # faithful "clone" for forward semantics.
    output = x
    return output, g, loss


if __name__ == "__main__":
    key = jax.random.PRNGKey(0)
    k1, k2 = jax.random.split(key)

    # Small shapes consistent with the module: NCHW feature maps.
    a, b, c, d = 2, 4, 16, 16
    x = jax.random.normal(k1, (a, b, c, d), dtype=jnp.float32)

    # Deterministic style target: Gram matrix of some "style" feature maps
    # (what would be passed to StyleLoss.__init__ as `target`).
    style_feats = jax.random.normal(k2, (a, b, c, d), dtype=jnp.float32)
    weight = 1000.0
    sf = style_feats.reshape(a * b, c * d)
    target_gram = (sf @ sf.T) / (a * b * c * d)
    target_scaled = target_gram * weight        # self.target = target.detach() * weight

    # Exact (float32) path.
    out, G, loss = style_loss_forward(x, target_scaled, weight)
    jax.block_until_ready((out, G, loss))

    f = x.reshape(a * b, c * d)
    G_ref = (f @ f.T) / (a * b * c * d) * weight
    loss_ref = jnp.mean((G_ref - target_scaled) ** 2)

    assert jnp.allclose(out, x), "output must equal input (clone semantics)"
    assert jnp.allclose(G, G_ref, rtol=1e-5, atol=1e-5), "Gram matrix mismatch"
    assert jnp.allclose(loss, loss_ref, rtol=1e-5, atol=1e-5), "loss mismatch"

    print("KERNEL_OK")
</pallas_src>

<mosaic_0001>
module attributes {stable_mosaic.version = 11 : i64} {
  func.func @_style_loss_kernel(%arg0: i32, %arg1: i32, %arg2: i32, %arg3: memref<128x256xf32, #tpu.memory_space<vmem>>, %arg4: memref<128x256xf32, #tpu.memory_space<vmem>>, %arg5: memref<128x128xf32, #tpu.memory_space<vmem>>, %arg6: memref<128x128xf32, #tpu.memory_space<vmem>>, %arg7: memref<1x1x1x128xf32, #tpu.memory_space<vmem>>, %arg8: memref<128x128xf32, #tpu.memory_space<vmem>>) attributes {dimension_semantics = [#tpu.dimension_semantics<parallel>, #tpu.dimension_semantics<parallel>, #tpu.dimension_semantics<arbitrary>], iteration_bounds = array<i64: 1, 1, 1>, scalar_prefetch = 0 : i64, scratch_operands = 1 : i64, tpu.core_type = #tpu.core_type<tc>, window_params = [{transform_indices = @transform_0, window_bounds = array<i64: 128, 256>}, {transform_indices = @transform_1, window_bounds = array<i64: 128, 256>}, {transform_indices = @transform_2, window_bounds = array<i64: 128, 128>}, {transform_indices = @transform_3, window_bounds = array<i64: 128, 128>}, {transform_indices = @transform_4, window_bounds = array<i64: 1, 1, 1, 128>}]} {
    %c0_i32 = arith.constant 0 : i32
    %0 = arith.cmpi eq, %arg2, %c0_i32 : i32
    %1 = arith.extui %0 : i1 to i32
    %c0_i32_0 = arith.constant 0 : i32
    %2 = arith.cmpi ne, %1, %c0_i32_0 : i32
    scf.if %2 {
      %cst_10 = arith.constant 0.000000e+00 : f32
      %12 = vector.broadcast %cst_10 : f32 to vector<128x128xf32>
      %c0_11 = arith.constant 0 : index
      %c0_12 = arith.constant 0 : index
      %13 = vector.load %arg8[%c0_11, %c0_12] : memref<128x128xf32, #tpu.memory_space<vmem>>, vector<128x128xf32>
      tpu.vector_store %arg8[%c0_11, %c0_12], %12 {strides = array<i32>} : memref<128x128xf32, #tpu.memory_space<vmem>>, vector<128x128xf32>,
    } else {
    }
    %c0 = arith.constant 0 : index
    %c0_1 = arith.constant 0 : index
    %3 = vector.load %arg8[%c0, %c0_1] : memref<128x128xf32, #tpu.memory_space<vmem>>, vector<128x128xf32>
    %c0_2 = arith.constant 0 : index
    %c0_3 = arith.constant 0 : index
    %4 = vector.load %arg3[%c0_2, %c0_3] : memref<128x256xf32, #tpu.memory_space<vmem>>, vector<128x256xf32>
    %c0_4 = arith.constant 0 : index
    %c0_5 = arith.constant 0 : index
    %5 = vector.load %arg4[%c0_4, %c0_5] : memref<128x256xf32, #tpu.memory_space<vmem>>, vector<128x256xf32>
    %cst = arith.constant dense<0.000000e+00> : vector<128x128xf32>
    %6 = tpu.matmul %4, %5, %cst {dimension_numbers = #tpu.dot_dimension_numbers<[1], [1], [0], [0], [0, 0, 1, 0], [], []>} : vector<128x256xf32>, vector<128x256xf32>, vector<128x128xf32> -> vector<128x128xf32>
    %7 = arith.addf %3, %6 : vector<128x128xf32>
    %c0_6 = arith.constant 0 : index
    %c0_7 = arith.constant 0 : index
    %8 = vector.load %arg8[%c0_6, %c0_7] : memref<128x128xf32, #tpu.memory_space<vmem>>, vector<128x128xf32>
    tpu.vector_store %arg8[%c0_6, %c0_7], %7 {strides = array<i32>} : memref<128x128xf32, #tpu.memory_space<vmem>>, vector<128x128xf32>,
    %c0_i32_8 = arith.constant 0 : i32
    %9 = arith.cmpi eq, %arg2, %c0_i32_8 : i32
    %10 = arith.extui %9 : i1 to i32
    %c0_i32_9 = arith.constant 0 : i32
    %11 = arith.cmpi ne, %10, %c0_i32_9 : i32
    scf.if %11 {
      %c0_10 = arith.constant 0 : index
      %c0_11 = arith.constant 0 : index
      %12 = vector.load %arg8[%c0_10, %c0_11] : memref<128x128xf32, #tpu.memory_space<vmem>>, vector<128x128xf32>
      %cst_12 = arith.constant 0.48828125 : f32
      %13 = vector.broadcast %cst_12 : f32 to vector<128x128xf32>
      %14 = arith.mulf %12, %13 : vector<128x128xf32>
      %c0_13 = arith.constant 0 : index
      %c0_14 = arith.constant 0 : index
      %15 = vector.load %arg6[%c0_13, %c0_14] : memref<128x128xf32, #tpu.memory_space<vmem>>, vector<128x128xf32>
      tpu.vector_store %arg6[%c0_13, %c0_14], %14 {strides = array<i32>} : memref<128x128xf32, #tpu.memory_space<vmem>>, vector<128x128xf32>,
      %c0_15 = arith.constant 0 : index
      %c0_16 = arith.constant 0 : index
      %16 = vector.load %arg5[%c0_15, %c0_16] : memref<128x128xf32, #tpu.memory_space<vmem>>, vector<128x128xf32>
      %17 = arith.subf %14, %16 : vector<128x128xf32>
      %18 = arith.mulf %17, %17 : vector<128x128xf32>
      %cst_17 = arith.constant dense<0.000000e+00> : vector<128xf32>
      %19 = vector.multi_reduction <add>, %18, %cst_17 [0] : vector<128x128xf32> to vector<128xf32>
      %20 = vector.shape_cast %19 : vector<128xf32> to vector<1x128xf32>
      %21 = vector.shape_cast %20 : vector<1x128xf32> to vector<1x1x1x128xf32>
      %c0_18 = arith.constant 0 : index
      %c0_19 = arith.constant 0 : index
      %c0_20 = arith.constant 0 : index
      %c0_21 = arith.constant 0 : index
      %22 = vector.load %arg7[%c0_18, %c0_19, %c0_20, %c0_21] : memref<1x1x1x128xf32, #tpu.memory_space<vmem>>, vector<1x1x1x128xf32>
      tpu.vector_store %arg7[%c0_18, %c0_19, %c0_20, %c0_21], %21 {strides = array<i32>} : memref<1x1x1x128xf32, #tpu.memory_space<vmem>>, vector<1x1x1x128xf32>,
    } else {
    }
    return
  }
  func.func @transform_0(%arg0: i32, %arg1: i32, %arg2: i32) -> (i32, i32) {
    %c0_i32 = arith.constant 0 : i32
    return %arg0, %arg2 : i32, i32
  }
  func.func @transform_1(%arg0: i32, %arg1: i32, %arg2: i32) -> (i32, i32) {
    %c0_i32 = arith.constant 0 : i32
    return %arg1, %arg2 : i32, i32
  }
  func.func @transform_2(%arg0: i32, %arg1: i32, %arg2: i32) -> (i32, i32) {
    %c0_i32 = arith.constant 0 : i32
    return %arg0, %arg1 : i32, i32
  }
  func.func @transform_3(%arg0: i32, %arg1: i32, %arg2: i32) -> (i32, i32) {
    %c0_i32 = arith.constant 0 : i32
    return %arg0, %arg1 : i32, i32
  }
  func.func @transform_4(%arg0: i32, %arg1: i32, %arg2: i32) -> (i32, i32, i32, i32) {
    %c0_i32 = arith.constant 0 : i32
    %c0_i32_0 = arith.constant 0 : i32
    %c0_i32_1 = arith.constant 0 : i32
    return %arg0, %arg1, %c0_i32, %c0_i32_0 : i32, i32, i32, i32
  }
}

</mosaic_0001>

<llo_original>
// kernel: tpu_custom_call.1
$region0: #{tpu_custom_call.1}
  #allocation0 [shape = 'u32[]', space=smem, size = 0x4, offset = 0x4, fixed_abs, tag = 'smem constant byte address 0x4 - core index']
  #allocation1 [shape = 'u32[144,128]{1,0:T(1,128)}', space=vmem, size = 0x12000, scoped, tag = 'internal scratch']
  #allocation2 [shape = 'f32[128,128]{1,0:T(8,128)}', space=vmem, size = 0x10000, scoped, tag = 'scratch operand']
  %s0 = inlined_call_operand.hbm [shape: f32[128,256], index: 0, kind: input, shape index: {}]
  %s1 = inlined_call_operand.hbm [shape: f32[128,256], index: 1, kind: input, shape index: {}]
  %s2 = inlined_call_operand.hbm [shape: f32[128,128], index: 2, kind: input, shape index: {}]
  %s3 = inlined_call_operand.hbm [shape: f32[128,128], index: 3, kind: output, shape index: {0}]
  %s4 = inlined_call_operand.hbm [shape: f32[1,1,1,128], index: 4, kind: output, shape index: {1}]
  %5 = xla_tuple %s3, %s4
  %s6 = sld [smem:[#allocation0]]
  $region50: #{tpu_custom_call.1} parent=0
    _
  %s8 = ssub.s32 1, %s6
  %s9 = scalar_select 0, %s8, %s6
  $region1: #{tpu_custom_call.1} parent=0
    #allocation3 [shape = 'u8[131072]{0}', space=vmem, size = 0x20000, scoped, tag = 'input window, operand 0, single buffered']
    #allocation4 [shape = 's32[1]{0}', space=sflag, size = 0x4, scoped, tag = 'scoped memory for tpu_custom_call.1']
    #allocation5 [shape = 's32[1]{0}', space=sflag, size = 0x4, scoped, tag = 'scoped memory for tpu_custom_call.1']
    #allocation6 [shape = 'u8[131072]{0}', space=vmem, size = 0x20000, scoped, tag = 'input window, operand 1, single buffered']
    #allocation7 [shape = 's32[1]{0}', space=sflag, size = 0x4, scoped, tag = 'scoped memory for tpu_custom_call.1']
    #allocation8 [shape = 'u8[65536]{0}', space=vmem, size = 0x10000, scoped, tag = 'input window, operand 2, single buffered']
    #allocation9 [shape = 'u8[65536]{0}', space=vmem, size = 0x10000, scoped, tag = 'output window, operand 0, single buffered']
    #allocation10 [shape = 'u8[512]{0}', space=vmem, size = 0x400, scoped, tag = 'output window, operand 1, single buffered']
    #allocation11 [shape = 's32[1]{0}', space=sflag, size = 0x4, scoped, tag = 'scoped memory for tpu_custom_call.1']
    %10 = vsyncpa [#allocation4], 0
    %11 = vsyncpa [#allocation7], 0
    %12 = vsyncpa [#allocation5], 0
    %13 = vsyncpa [#allocation11], 0
    // Predicated region
    $region2: #{tpu_custom_call.1} parent=1 // pred_check
      _
    $region3: #{tpu_custom_call.1} parent=1 // pred_check_branch
      %15 = sbr.rel (0) target = $region5
    $region4: #{tpu_custom_call.1} parent=1 // pred_region
      %s17 = ssub.s32 4096, 4096
      %18 = vsyncadd [#allocation4], %s17
      %s19 = sshll.u32 [#allocation3], 4
      %s20 = int_to_ptr.vmem [resolvable:$true] %s19
      %25 = dma.hbm_to_vmem [thread:$0]  %s0, 4096, %s20, [#allocation4], 256, 256, 16
    $region5: #{tpu_custom_call.1} parent=1 // pred_fallthru
      _
    // Predicated region
    $region6: #{tpu_custom_call.1} parent=1 // pred_check
      _
    $region7: #{tpu_custom_call.1} parent=1 // pred_check_branch
      %27 = sbr.rel (0) target = $region9
    $region8: #{tpu_custom_call.1} parent=1 // pred_region
      %s29 = ssub.s32 4096, 4096
      %30 = vsyncadd [#allocation7], %s29
      %s31 = sshll.u32 [#allocation6], 4
      %s32 = int_to_ptr.vmem [resolvable:$true] %s31
      %37 = dma.hbm_to_vmem [thread:$0]  %s1, 4096, %s32, [#allocation7], 256, 256, 16
    $region9: #{tpu_custom_call.1} parent=1 // pred_fallthru
      _
    // Predicated region
    $region10: #{tpu_custom_call.1} parent=1 // pred_check
      _
    $region11: #{tpu_custom_call.1} parent=1 // pred_check_branch
      %39 = sbr.rel (0) target = $region13
    $region12: #{tpu_custom_call.1} parent=1 // pred_region
      %s41 = ssub.s32 2048, 2048
      %42 = vsyncadd [#allocation7], %s41
      %s43 = sshll.u32 [#allocation8], 4
      %s44 = int_to_ptr.vmem [resolvable:$true] %s43
      %49 = dma.hbm_to_vmem [thread:$0]  %s2, 2048, %s44, [#allocation7], 128, 128, 8
    $region13: #{tpu_custom_call.1} parent=1 // pred_fallthru
      _
    // Predicated region
    $region14: #{tpu_custom_call.1} parent=1 // pred_check
      _
    $region15: #{tpu_custom_call.1} parent=1 // pred_check_branch
      %51 = sbr.rel (0) target = $region17
    $region16: #{tpu_custom_call.1} parent=1 // pred_region
      %52 = dma.done [#allocation4], 4096
    $region17: #{tpu_custom_call.1} parent=1 // pred_fallthru
      _
    // Predicated region
    $region18: #{tpu_custom_call.1} parent=1 // pred_check
      _
    $region19: #{tpu_custom_call.1} parent=1 // pred_check_branch
      %54 = sbr.rel (0) target = $region21
    $region20: #{tpu_custom_call.1} parent=1 // pred_region
      %55 = dma.done [#allocation7], 4096
    $region21: #{tpu_custom_call.1} parent=1 // pred_fallthru
      _
    // Predicated region
    $region22: #{tpu_custom_call.1} parent=1 // pred_check
      _
    $region23: #{tpu_custom_call.1} parent=1 // pred_check_branch
      %57 = sbr.rel (0) target = $region25
    $region24: #{tpu_custom_call.1} parent=1 // pred_region
      %58 = dma.done [#allocation7], 2048
    $region25: #{tpu_custom_call.1} parent=1 // pred_fallthru
      _
    %p59 = scmp.eq.s32.totalorder 0, 0
    // Predicated region
    $region26: #{tpu_custom_call.1} parent=1 // pred_check
      %p60 = pneg %p59
    $region27: #{tpu_custom_call.1} parent=1 // pred_check_branch
      %62 = sbr.rel (%p60) target = $region29
    $region28: #{tpu_custom_call.1} parent=1 // pred_region
      %63 = vst [vmem:[#allocation2] sm:$0xff] 0.0
      %64 = vst [vmem:[#allocation2 + $0x8] sm:$0xff] 0.0
      %65 = vst [vmem:[#allocation2 + $0x10] sm:$0xff] 0.0
      %66 = vst [vmem:[#allocation2 + $0x18] sm:$0xff] 0.0
      %67 = vst [vmem:[#allocation2 + $0x20] sm:$0xff] 0.0
      %68 = vst [vmem:[#allocation2 + $0x28] sm:$0xff] 0.0
      %69 = vst [vmem:[#allocation2 + $0x30] sm:$0xff] 0.0
      %70 = vst [vmem:[#allocation2 + $0x38] sm:$0xff] 0.0
      %71 = vst [vmem:[#allocation2 + $0x40] sm:$0xff] 0.0
      %72 = vst [vmem:[#allocation2 + $0x48] sm:$0xff] 0.0
      %73 = vst [vmem:[#allocation2 + $0x50] sm:$0xff] 0.0
      %74 = vst [vmem:[#allocation2 + $0x58] sm:$0xff] 0.0
      %75 = vst [vmem:[#allocation2 + $0x60] sm:$0xff] 0.0
      %76 = vst [vmem:[#allocation2 + $0x68] sm:$0xff] 0.0
      %77 = vst [vmem:[#allocation2 + $0x70] sm:$0xff] 0.0
      %78 = vst [vmem:[#allocation2 + $0x78] sm:$0xff] 0.0
    $region29: #{tpu_custom_call.1} parent=1 // pred_fallthru
      _
    %v79 = vld [vmem:[#allocation2] sm:$0xff]
    %v80 = vld [vmem:[#allocation2 + $0x8] sm:$0xff]
    %v81 = vld [vmem:[#allocation2 + $0x10] sm:$0xff]
    %v82 = vld [vmem:[#allocation2 + $0x18] sm:$0xff]
    %v83 = vld [vmem:[#allocation2 + $0x20] sm:$0xff]
    %v84 = vld [vmem:[#allocation2 + $0x28] sm:$0xff]
    %v85 = vld [vmem:[#allocation2 + $0x30] sm:$0xff]
    %v86 = vld [vmem:[#allocation2 + $0x38] sm:$0xff]
    %v87 = vld [vmem:[#allocation2 + $0x40] sm:$0xff]
    %v88 = vld [vmem:[#allocation2 + $0x48] sm:$0xff]
    %v89 = vld [vmem:[#allocation2 + $0x50] sm:$0xff]
    %v90 = vld [vmem:[#allocation2 + $0x58] sm:$0xff]
    %v91 = vld [vmem:[#allocation2 + $0x60] sm:$0xff]
    %v92 = vld [vmem:[#allocation2 + $0x68] sm:$0xff]
    %v93 = vld [vmem:[#allocation2 + $0x70] sm:$0xff]
    %v94 = vld [vmem:[#allocation2 + $0x78] sm:$0xff]
    %v95 = vld [vmem:[#allocation3] sm:$0xff]
    %v96 = vld [vmem:[#allocation3 + $0x8] sm:$0xff]
    %v97 = vld [vmem:[#allocation3 + $0x10] sm:$0xff]
    %v98 = vld [vmem:[#allocation3 + $0x18] sm:$0xff]
    %v99 = vld [vmem:[#allocation3 + $0x20] sm:$0xff]
    %v100 = vld [vmem:[#allocation3 + $0x28] sm:$0xff]
    %v101 = vld [vmem:[#allocation3 + $0x30] sm:$0xff]
    %v102 = vld [vmem:[#allocation3 + $0x38] sm:$0xff]
    %v103 = vld [vmem:[#allocation3 + $0x40] sm:$0xff]
    %v104 = vld [vmem:[#allocation3 + $0x48] sm:$0xff]
    %v105 = vld [vmem:[#allocation3 + $0x50] sm:$0xff]
    %v106 = vld [vmem:[#allocation3 + $0x58] sm:$0xff]
    %v107 = vld [vmem:[#allocation3 + $0x60] sm:$0xff]
    %v108 = vld [vmem:[#allocation3 + $0x68] sm:$0xff]
    %v109 = vld [vmem:[#allocation3 + $0x70] sm:$0xff]
    %v110 = vld [vmem:[#allocation3 + $0x78] sm:$0xff]
    %v111 = vld [vmem:[#allocation3 + $0x80] sm:$0xff]
    %v112 = vld [vmem:[#allocation3 + $0x88] sm:$0xff]
    %v113 = vld [vmem:[#allocation3 + $0x90] sm:$0xff]
    %v114 = vld [vmem:[#allocation3 + $0x98] sm:$0xff]
    %v115 = vld [vmem:[#allocation3 + $0xa0] sm:$0xff]
    %v116 = vld [vmem:[#allocation3 + $0xa8] sm:$0xff]
    %v117 = vld [vmem:[#allocation3 + $0xb0] sm:$0xff]
    %v118 = vld [vmem:[#allocation3 + $0xb8] sm:$0xff]
    %v119 = vld [vmem:[#allocation3 + $0xc0] sm:$0xff]
    %v120 = vld [vmem:[#allocation3 + $0xc8] sm:$0xff]
    %v121 = vld [vmem:[#allocation3 + $0xd0] sm:$0xff]
    %v122 = vld [vmem:[#allocation3 + $0xd8] sm:$0xff]
    %v123 = vld [vmem:[#allocation3 + $0xe0] sm:$0xff]
    %v124 = vld [vmem:[#allocation3 + $0xe8] sm:$0xff]
    %v125 = vld [vmem:[#allocation3 + $0xf0] sm:$0xff]
    %v126 = vld [vmem:[#allocation3 + $0xf8] sm:$0xff]
    %v127 = vld [vmem:[#allocation6] sm:$0xff]
    %v128 = vld [vmem:[#allocation6 + $0x8] sm:$0xff]
    %v129 = vld [vmem:[#allocation6 + $0x10] sm:$0xff]
    %v130 = vld [vmem:[#allocation6 + $0x18] sm:$0xff]
    %v131 = vld [vmem:[#allocation6 + $0x20] sm:$0xff]
    %v132 = vld [vmem:[#allocation6 + $0x28] sm:$0xff]
    %v133 = vld [vmem:[#allocation6 + $0x30] sm:$0xff]
    %v134 = vld [vmem:[#allocation6 + $0x38] sm:$0xff]
    %v135 = vld [vmem:[#allocation6 + $0x40] sm:$0xff]
    %v136 = vld [vmem:[#allocation6 + $0x48] sm:$0xff]
    %v137 = vld [vmem:[#allocation6 + $0x50] sm:$0xff]
    %v138 = vld [vmem:[#allocation6 + $0x58] sm:$0xff]
    %v139 = vld [vmem:[#allocation6 + $0x60] sm:$0xff]
    %v140 = vld [vmem:[#allocation6 + $0x68] sm:$0xff]
    %v141 = vld [vmem:[#allocation6 + $0x70] sm:$0xff]
    %v142 = vld [vmem:[#allocation6 + $0x78] sm:$0xff]
    %v143 = vld [vmem:[#allocation6 + $0x80] sm:$0xff]
    %v144 = vld [vmem:[#allocation6 + $0x88] sm:$0xff]
    %v145 = vld [vmem:[#allocation6 + $0x90] sm:$0xff]
    %v146 = vld [vmem:[#allocation6 + $0x98] sm:$0xff]
    %v147 = vld [vmem:[#allocation6 + $0xa0] sm:$0xff]
    %v148 = vld [vmem:[#allocation6 + $0xa8] sm:$0xff]
    %v149 = vld [vmem:[#allocation6 + $0xb0] sm:$0xff]
    %v150 = vld [vmem:[#allocation6 + $0xb8] sm:$0xff]
    %v151 = vld [vmem:[#allocation6 + $0xc0] sm:$0xff]
    %v152 = vld [vmem:[#allocation6 + $0xc8] sm:$0xff]
    %v153 = vld [vmem:[#allocation6 + $0xd0] sm:$0xff]
    %v154 = vld [vmem:[#allocation6 + $0xd8] sm:$0xff]
    %v155 = vld [vmem:[#allocation6 + $0xe0] sm:$0xff]
    %v156 = vld [vmem:[#allocation6 + $0xe8] sm:$0xff]
    %v157 = vld [vmem:[#allocation6 + $0xf0] sm:$0xff]
    %v158 = vld [vmem:[#allocation6 + $0xf8] sm:$0xff]
    %159 = vmatprep.subr.mxu0 %v128
    %160 = vmatpush1.xpose.msra.mxu0 %v127
    %161 = vmatprep.subr.mxu0 %v130
    %162 = vmatpush1.xpose.msra.mxu0 %v129
    %163 = vmatprep.subr.mxu0 %v132
    %164 = vmatpush1.xpose.msra.mxu0 %v131
    %165 = vmatprep.subr.mxu0 %v134
    %166 = vmatpush1.xpose.msra.mxu0 %v133
    %167 = vmatprep.subr.mxu0 %v136
    %168 = vmatpush1.xpose.msra.mxu0 %v135
    %169 = vmatprep.subr.mxu0 %v138
    %170 = vmatpush1.xpose.msra.mxu0 %v137
    %171 = vmatprep.subr.mxu0 %v140
    %172 = vmatpush1.xpose.msra.mxu0 %v139
    %173 = vmatprep.subr.mxu0 %v142
    %174 = vmatpush1.xpose.msra.mxu0 %v141
    %175 = vmatprep.subr.mxu0 %v144
    %176 = vmatpush1.xpose.msra.mxu0 %v143
    %177 = vmatprep.subr.mxu0 %v146
    %178 = vmatpush1.xpose.msra.mxu0 %v145
    %179 = vmatprep.subr.mxu0 %v148
    %180 = vmatpush1.xpose.msra.mxu0 %v147
    %181 = vmatprep.subr.mxu0 %v150
    %182 = vmatpush1.xpose.msra.mxu0 %v149
    %183 = vmatprep.subr.mxu0 %v152
    %184 = vmatpush1.xpose.msra.mxu0 %v151
    %185 = vmatprep.subr.mxu0 %v154
    %186 = vmatpush1.xpose.msra.mxu0 %v153
    %187 = vmatprep.subr.mxu0 %v156
    %188 = vmatpush1.xpose.msra.mxu0 %v155
    %189 = vmatprep.subr.mxu0 %v158
    %190 = vmatpush1.xpose.msra.mxu0 %v157
    %191 = vmatprep.subr.mxu0 0.0
    %192 = vmatpush1.xpose.msra.mxu0 0.0
    %193 = vmatprep.subr.mxu0 0.0
    %194 = vmatpush1.xpose.msra.mxu0 0.0
    %195 = vmatprep.subr.mxu0 0.0
    %196 = vmatpush1.xpose.msra.mxu0 0.0
    %197 = vmatprep.subr.mxu0 0.0
    %198 = vmatpush1.xpose.msra.mxu0 0.0
    %199 = vmatprep.subr.mxu0 0.0
    %200 = vmatpush1.xpose.msra.mxu0 0.0
    %201 = vmatprep.subr.mxu0 0.0
    %202 = vmatpush1.xpose.msra.mxu0 0.0
    %203 = vmatprep.subr.mxu0 0.0
    %204 = vmatpush1.xpose.msra.mxu0 0.0
    %205 = vmatprep.subr.mxu0 0.0
    %206 = vmatpush1.xpose.msra.mxu0 0.0
    %207 = vmatprep.subr.mxu0 0.0
    %208 = vmatpush1.xpose.msra.mxu0 0.0
    %209 = vmatprep.subr.mxu0 0.0
    %210 = vmatpush1.xpose.msra.mxu0 0.0
    %211 = vmatprep.subr.mxu0 0.0
    %212 = vmatpush1.xpose.msra.mxu0 0.0
    %213 = vmatprep.subr.mxu0 0.0
    %214 = vmatpush1.xpose.msra.mxu0 0.0
    %215 = vmatprep.subr.mxu0 0.0
    %216 = vmatpush1.xpose.msra.mxu0 0.0
    %217 = vmatprep.subr.mxu0 0.0
    %218 = vmatpush1.xpose.msra.mxu0 0.0
    %219 = vmatprep.subr.mxu0 0.0
    %220 = vmatpush1.xpose.msra.mxu0 0.0
    %221 = vmatprep.subr.mxu0 0.0
    %222 = vmatpush1.xpose.msra.mxu0 0.0
    %223 = vmatprep.mubr.f32.mxu0 %v96
    %224 = vmatmul.mubr.f32.gmra.mrb[0].mxu0 %v95
    %v225 = vpop.f32.mrb[0].mxu0
    %v226 = vadd.f32 0.0, %v225
    %v227 = vpop.f32.mrb[0].mxu0
    %228 = vmatprep.mubr.f32.mxu0 %v98
    %229 = vmatmul.mubr.f32.gmra.mrb[0].mxu0 %v97
    %v230 = vpop.f32.mrb[0].mxu0
    %v231 = vadd.f32 0.0, %v230
    %v232 = vpop.f32.mrb[0].mxu0
    %233 = vmatprep.mubr.f32.mxu0 %v100
    %234 = vmatmul.mubr.f32.gmra.mrb[0].mxu0 %v99
    %v235 = vpop.f32.mrb[0].mxu0
    %v236 = vadd.f32 0.0, %v235
    %v237 = vpop.f32.mrb[0].mxu0
    %238 = vmatprep.mubr.f32.mxu0 %v102
    %239 = vmatmul.mubr.f32.gmra.mrb[0].mxu0 %v101
    %v240 = vpop.f32.mrb[0].mxu0
    %v241 = vadd.f32 0.0, %v240
    %v242 = vpop.f32.mrb[0].mxu0
    %243 = vmatprep.mubr.f32.mxu0 %v104
    %244 = vmatmul.mubr.f32.gmra.mrb[0].mxu0 %v103
    %v245 = vpop.f32.mrb[0].mxu0
    %v246 = vadd.f32 0.0, %v245
    %v247 = vpop.f32.mrb[0].mxu0
    %248 = vmatprep.mubr.f32.mxu0 %v106
    %249 = vmatmul.mubr.f32.gmra.mrb[0].mxu0 %v105
    %v250 = vpop.f32.mrb[0].mxu0
    %v251 = vadd.f32 0.0, %v250
    %v252 = vpop.f32.mrb[0].mxu0
    %253 = vmatprep.mubr.f32.mxu0 %v108
    %254 = vmatmul.mubr.f32.gmra.mrb[0].mxu0 %v107
    %v255 = vpop.f32.mrb[0].mxu0
    %v256 = vadd.f32 0.0, %v255
    %v257 = vpop.f32.mrb[0].mxu0
    %258 = vmatprep.mubr.f32.mxu0 %v110
    %259 = vmatmul.mubr.f32.gmra.mrb[0].mxu0 %v109
    %v260 = vpop.f32.mrb[0].mxu0
    %v261 = vadd.f32 0.0, %v260
    %v262 = vpop.f32.mrb[0].mxu0
    %263 = vmatprep.mubr.f32.mxu0 %v112
    %264 = vmatmul.mubr.f32.gmra.mrb[0].mxu0 %v111
    %v265 = vpop.f32.mrb[0].mxu0
    %v266 = vadd.f32 0.0, %v265
    %v267 = vpop.f32.mrb[0].mxu0
    %268 = vmatprep.mubr.f32.mxu0 %v114
    %269 = vmatmul.mubr.f32.gmra.mrb[0].mxu0 %v113
    %v270 = vpop.f32.mrb[0].mxu0
    %v271 = vadd.f32 0.0, %v270
    %v272 = vpop.f32.mrb[0].mxu0
    %273 = vmatprep.mubr.f32.mxu0 %v116
    %274 = vmatmul.mubr.f32.gmra.mrb[0].mxu0 %v115
    %v275 = vpop.f32.mrb[0].mxu0
    %v276 = vadd.f32 0.0, %v275
    %v277 = vpop.f32.mrb[0].mxu0
    %278 = vmatprep.mubr.f32.mxu0 %v118
    %279 = vmatmul.mubr.f32.gmra.mrb[0].mxu0 %v117
    %v280 = vpop.f32.mrb[0].mxu0
    %v281 = vadd.f32 0.0, %v280
    %v282 = vpop.f32.mrb[0].mxu0
    %283 = vmatprep.mubr.f32.mxu0 %v120
    %284 = vmatmul.mubr.f32.gmra.mrb[0].mxu0 %v119
    %v285 = vpop.f32.mrb[0].mxu0
    %v286 = vadd.f32 0.0, %v285
    %v287 = vpop.f32.mrb[0].mxu0
    %288 = vmatprep.mubr.f32.mxu0 %v122
    %289 = vmatmul.mubr.f32.gmra.mrb[0].mxu0 %v121
    %v290 = vpop.f32.mrb[0].mxu0
    %v291 = vadd.f32 0.0, %v290
    %v292 = vpop.f32.mrb[0].mxu0
    %293 = vmatprep.mubr.f32.mxu0 %v124
    %294 = vmatmul.mubr.f32.gmra.mrb[0].mxu0 %v123
    %v295 = vpop.f32.mrb[0].mxu0
    %v296 = vadd.f32 0.0, %v295
    %v297 = vpop.f32.mrb[0].mxu0
    %298 = vmatprep.mubr.f32.mxu0 %v126
    %299 = vmatmul.mubr.f32.gmra.mrb[0].mxu0 %v125
    %v300 = vpop.f32.mrb[0].mxu0
    %v301 = vadd.f32 0.0, %v300
    %v302 = vpop.f32.mrb[0].mxu0
    %303 = vdwg.mxu0
    %v304 = vadd.f32 %v79, %v226
    %v305 = vadd.f32 %v80, %v231
    %v306 = vadd.f32 %v81, %v236
    %v307 = vadd.f32 %v82, %v241
    %v308 = vadd.f32 %v83, %v246
    %v309 = vadd.f32 %v84, %v251
    %v310 = vadd.f32 %v85, %v256
    %v311 = vadd.f32 %v86, %v261
    %v312 = vadd.f32 %v87, %v266
    %v313 = vadd.f32 %v88, %v271
    %v314 = vadd.f32 %v89, %v276
    %v315 = vadd.f32 %v90, %v281
    %v316 = vadd.f32 %v91, %v286
    %v317 = vadd.f32 %v92, %v291
    %v318 = vadd.f32 %v93, %v296
    %v319 = vadd.f32 %v94, %v301
    %320 = vst [vmem:[#allocation2] sm:$0xff] %v304
    %321 = vst [vmem:[#allocation2 + $0x8] sm:$0xff] %v305
    %322 = vst [vmem:[#allocation2 + $0x10] sm:$0xff] %v306
    %323 = vst [vmem:[#allocation2 + $0x18] sm:$0xff] %v307
    %324 = vst [vmem:[#allocation2 + $0x20] sm:$0xff] %v308
    %325 = vst [vmem:[#allocation2 + $0x28] sm:$0xff] %v309
    %326 = vst [vmem:[#allocation2 + $0x30] sm:$0xff] %v310
    %327 = vst [vmem:[#allocation2 + $0x38] sm:$0xff] %v311
    %328 = vst [vmem:[#allocation2 + $0x40] sm:$0xff] %v312
    %329 = vst [vmem:[#allocation2 + $0x48] sm:$0xff] %v313
    %330 = vst [vmem:[#allocation2 + $0x50] sm:$0xff] %v314
    %331 = vst [vmem:[#allocation2 + $0x58] sm:$0xff] %v315
    %332 = vst [vmem:[#allocation2 + $0x60] sm:$0xff] %v316
    %333 = vst [vmem:[#allocation2 + $0x68] sm:$0xff] %v317
    %334 = vst [vmem:[#allocation2 + $0x70] sm:$0xff] %v318
    %335 = vst [vmem:[#allocation2 + $0x78] sm:$0xff] %v319
    // Predicated region
    $region30: #{tpu_custom_call.1} parent=1 // pred_check
      %p336 = pneg %p59
    $region31: #{tpu_custom_call.1} parent=1 // pred_check_branch
      %338 = sbr.rel (%p336) target = $region33
    $region32: #{tpu_custom_call.1} parent=1 // pred_region
      %v339 = vld [vmem:[#allocation2] sm:$0xff]
      %v340 = vld [vmem:[#allocation2 + $0x8] sm:$0xff]
      %v341 = vld [vmem:[#allocation2 + $0x10] sm:$0xff]
      %v342 = vld [vmem:[#allocation2 + $0x18] sm:$0xff]
      %v343 = vld [vmem:[#allocation2 + $0x20] sm:$0xff]
      %v344 = vld [vmem:[#allocation2 + $0x28] sm:$0xff]
      %v345 = vld [vmem:[#allocation2 + $0x30] sm:$0xff]
      %v346 = vld [vmem:[#allocation2 + $0x38] sm:$0xff]
      %v347 = vld [vmem:[#allocation2 + $0x40] sm:$0xff]
      %v348 = vld [vmem:[#allocation2 + $0x48] sm:$0xff]
      %v349 = vld [vmem:[#allocation2 + $0x50] sm:$0xff]
      %v350 = vld [vmem:[#allocation2 + $0x58] sm:$0xff]
      %v351 = vld [vmem:[#allocation2 + $0x60] sm:$0xff]
      %v352 = vld [vmem:[#allocation2 + $0x68] sm:$0xff]
      %v353 = vld [vmem:[#allocation2 + $0x70] sm:$0xff]
      %v354 = vld [vmem:[#allocation2 + $0x78] sm:$0xff]
      %v355 = vmul.f32 %v339, 0.48828125
      %v356 = vmul.f32 %v340, 0.48828125
      %v357 = vmul.f32 %v341, 0.48828125
      %v358 = vmul.f32 %v342, 0.48828125
      %v359 = vmul.f32 %v343, 0.48828125
      %v360 = vmul.f32 %v344, 0.48828125
      %v361 = vmul.f32 %v345, 0.48828125
      %v362 = vmul.f32 %v346, 0.48828125
      %v363 = vmul.f32 %v347, 0.48828125
      %v364 = vmul.f32 %v348, 0.48828125
      %v365 = vmul.f32 %v349, 0.48828125
      %v366 = vmul.f32 %v350, 0.48828125
      %v367 = vmul.f32 %v351, 0.48828125
      %v368 = vmul.f32 %v352, 0.48828125
      %v369 = vmul.f32 %v353, 0.48828125
      %v370 = vmul.f32 %v354, 0.48828125
      %371 = vst [vmem:[#allocation9] sm:$0xff] %v355
      %372 = vst [vmem:[#allocation9 + $0x8] sm:$0xff] %v356
      %373 = vst [vmem:[#allocation9 + $0x10] sm:$0xff] %v357
      %374 = vst [vmem:[#allocation9 + $0x18] sm:$0xff] %v358
      %375 = vst [vmem:[#allocation9 + $0x20] sm:$0xff] %v359
      %376 = vst [vmem:[#allocation9 + $0x28] sm:$0xff] %v360
      %377 = vst [vmem:[#allocation9 + $0x30] sm:$0xff] %v361
      %378 = vst [vmem:[#allocation9 + $0x38] sm:$0xff] %v362
      %379 = vst [vmem:[#allocation9 + $0x40] sm:$0xff] %v363
      %380 = vst [vmem:[#allocation9 + $0x48] sm:$0xff] %v364
      %381 = vst [vmem:[#allocation9 + $0x50] sm:$0xff] %v365
      %382 = vst [vmem:[#allocation9 + $0x58] sm:$0xff] %v366
      %383 = vst [vmem:[#allocation9 + $0x60] sm:$0xff] %v367
      %384 = vst [vmem:[#allocation9 + $0x68] sm:$0xff] %v368
      %385 = vst [vmem:[#allocation9 + $0x70] sm:$0xff] %v369
      %386 = vst [vmem:[#allocation9 + $0x78] sm:$0xff] %v370
      %v387 = vld [vmem:[#allocation8] sm:$0xff]
      %v388 = vld [vmem:[#allocation8 + $0x8] sm:$0xff]
      %v389 = vld [vmem:[#allocation8 + $0x10] sm:$0xff]
      %v390 = vld [vmem:[#allocation8 + $0x18] sm:$0xff]
      %v391 = vld [vmem:[#allocation8 + $0x20] sm:$0xff]
      %v392 = vld [vmem:[#allocation8 + $0x28] sm:$0xff]
      %v393 = vld [vmem:[#allocation8 + $0x30] sm:$0xff]
      %v394 = vld [vmem:[#allocation8 + $0x38] sm:$0xff]
      %v395 = vld [vmem:[#allocation8 + $0x40] sm:$0xff]
      %v396 = vld [vmem:[#allocation8 + $0x48] sm:$0xff]
      %v397 = vld [vmem:[#allocation8 + $0x50] sm:$0xff]
      %v398 = vld [vmem:[#allocation8 + $0x58] sm:$0xff]
      %v399 = vld [vmem:[#allocation8 + $0x60] sm:$0xff]
      %v400 = vld [vmem:[#allocation8 + $0x68] sm:$0xff]
      %v401 = vld [vmem:[#allocation8 + $0x70] sm:$0xff]
      %v402 = vld [vmem:[#allocation8 + $0x78] sm:$0xff]
      %v403 = vsub.f32 %v355, %v387
      %v404 = vsub.f32 %v356, %v388
      %v405 = vsub.f32 %v357, %v389
      %v406 = vsub.f32 %v358, %v390
      %v407 = vsub.f32 %v359, %v391
      %v408 = vsub.f32 %v360, %v392
      %v409 = vsub.f32 %v361, %v393
      %v410 = vsub.f32 %v362, %v394
      %v411 = vsub.f32 %v363, %v395
      %v412 = vsub.f32 %v364, %v396
      %v413 = vsub.f32 %v365, %v397
      %v414 = vsub.f32 %v366, %v398
      %v415 = vsub.f32 %v367, %v399
      %v416 = vsub.f32 %v368, %v400
      %v417 = vsub.f32 %v369, %v401
      %v418 = vsub.f32 %v370, %v402
      %v419 = vmul.f32 %v403, %v403
      %v420 = vmul.f32 %v404, %v404
      %v421 = vmul.f32 %v405, %v405
      %v422 = vmul.f32 %v406, %v406
      %v423 = vmul.f32 %v407, %v407
      %v424 = vmul.f32 %v408, %v408
      %v425 = vmul.f32 %v409, %v409
      %v426 = vmul.f32 %v410, %v410
      %v427 = vmul.f32 %v411, %v411
      %v428 = vmul.f32 %v412, %v412
      %v429 = vmul.f32 %v413, %v413
      %v430 = vmul.f32 %v414, %v414
      %v431 = vmul.f32 %v415, %v415
      %v432 = vmul.f32 %v416, %v416
      %v433 = vmul.f32 %v417, %v417
      %v434 = vmul.f32 %v418, %v418
      %v435 = vadd.f32 %v419, %v420
      %v436 = vadd.f32 %v435, %v421
      %v437 = vadd.f32 %v436, %v422
      %v438 = vadd.f32 %v437, %v423
      %v439 = vadd.f32 %v438, %v424
      %v440 = vadd.f32 %v439, %v425
      %v441 = vadd.f32 %v440, %v426
      %v442 = vadd.f32 %v441, %v427
      %v443 = vadd.f32 %v442, %v428
      %v444 = vadd.f32 %v443, %v429
      %v445 = vadd.f32 %v444, %v430
      %v446 = vadd.f32 %v445, %v431
      %v447 = vadd.f32 %v446, %v432
      %v448 = vadd.f32 %v447, %v433
      %v449 = vadd.f32 %v448, %v434
      %v450 = vrot.slane %v449, 4
      %v451 = vadd.f32 %v449, %v450
      %v452 = vrot.slane %v451, 2
      %v453 = vadd.f32 %v451, %v452
      %v454 = vrot.slane %v453, 1
      %v455 = vadd.f32 %v453, %v454
      %456 = vst [vmem:[#allocation10] sm:$0x1] %v455
    $region33: #{tpu_custom_call.1} parent=1 // pred_fallthru
      _
    // Predicated region
    $region34: #{tpu_custom_call.1} parent=1 // pred_check
      _
    $region35: #{tpu_custom_call.1} parent=1 // pred_check_branch
      %458 = sbr.rel (0) target = $region37
    $region36: #{tpu_custom_call.1} parent=1 // pred_region
      %s460 = ssub.s32 2048, 2048
      %461 = vsyncadd [#allocation5], %s460
      %s462 = sshll.u32 [#allocation9], 4
      %s463 = int_to_ptr.vmem [resolvable:$true] %s462
      %468 = dma.vmem_to_hbm [thread:$0]  %s463, 2048, %s3, [#allocation5], 128, 128, 8
    $region37: #{tpu_custom_call.1} parent=1 // pred_fallthru
      _
    // Predicated region
    $region38: #{tpu_custom_call.1} parent=1 // pred_check
      _
    $region39: #{tpu_custom_call.1} parent=1 // pred_check_branch
      %470 = sbr.rel (0) target = $region41
    $region40: #{tpu_custom_call.1} parent=1 // pred_region
      %s472 = ssub.s32 16, 16
      %473 = vsyncadd [#allocation11], %s472
      %s475 = sshll.u32 [#allocation10], 4
      %s476 = int_to_ptr.vmem [resolvable:$true] %s475
      %478 = dma.vmem_to_hbm [thread:$0]  %s476, 16, %s4, [#allocation11]
    $region41: #{tpu_custom_call.1} parent=1 // pred_fallthru
      _
    // Predicated region
    $region42: #{tpu_custom_call.1} parent=1 // pred_check
      _
    $region43: #{tpu_custom_call.1} parent=1 // pred_check_branch
      %480 = sbr.rel (0) target = $region45
    $region44: #{tpu_custom_call.1} parent=1 // pred_region
      %481 = dma.done [#allocation5], 2048
    $region45: #{tpu_custom_call.1} parent=1 // pred_fallthru
      _
    // Predicated region
    $region46: #{tpu_custom_call.1} parent=1 // pred_check
      _
    $region47: #{tpu_custom_call.1} parent=1 // pred_check_branch
      %483 = sbr.rel (0) target = $region49
    $region48: #{tpu_custom_call.1} parent=1 // pred_region
      %484 = dma.done [#allocation11], 16
    $region49: #{tpu_custom_call.1} parent=1 // pred_fallthru
      _
    %485 = vsyncpa [#allocation4], 1
    %486 = vsyncpa [#allocation7], 1
    %487 = vsyncpa [#allocation5], 1
    %488 = vsyncpa [#allocation11], 1

</llo_original>
